<compile_context>
chip_gen: v7x
topology: tpu7x:2x2x1
jax: 0.10.0
libtpu: 0.0.40
codegen_flags: <defaults>
</compile_context>

<pallas_src>
import functools

import jax
import jax.numpy as jnp
from jax.experimental import pallas as pl
from jax.experimental.pallas import tpu as pltpu


def _mlp_kernel(x_ref, w1_ref, b1_ref, w2_ref, b2_ref, o_ref):
    # Layer 1: f32 matmul with f32 accumulation, bias + ReLU epilogue on VPU.
    h = jnp.dot(x_ref[...], w1_ref[...], preferred_element_type=jnp.float32)
    h = jnp.maximum(h + b1_ref[...], 0.0)
    # Layer 2: f32 matmul, single VPU add initialized from the bias.
    out = b2_ref[...] + jnp.dot(h, w2_ref[...],
                                preferred_element_type=jnp.float32)
    o_ref[...] = out.astype(o_ref.dtype)


def _round_up(x, m):
    return ((x + m - 1) // m) * m


def _choose_batch_tile(batch, block_b):
    """Pick (tile, padded_batch).

    - >= 2 grid steps whenever B > 8 (v7x megacore: 2 TCs share the parallel
      grid axis; no effect on single-TC v5e/v6e).
    - tile = round_up(cdiv(B, n_tiles), 8) so padding never approaches 50%
      when B is just over a tile boundary.
    """
    n_tiles = max(pl.cdiv(batch, block_b), 2 if batch > 8 else 1)
    tb = _round_up(pl.cdiv(batch, n_tiles), 8)
    b_p = _round_up(batch, tb)
    return tb, b_p


def mlp_forward(x, w1_t, b1, w2_t, b2, *, block_b=4096):
    """Fused Linear -> ReLU -> Linear forward pass as a single Pallas kernel.

    x:    [B, in_features]           (float32)
    w1_t: [in_features, hidden]      (fc1.weight.T)
    b1:   [1, hidden]
    w2_t: [hidden, out_features]     (fc2.weight.T)
    b2:   [1, out_features]
    returns: [B, out_features] float32
    """
    B, in_f = x.shape
    hidden = w1_t.shape[1]
    out_f = w2_t.shape[1]

    tb, b_p = _choose_batch_tile(B, block_b)
    if b_p != B:
        # Only batch-row padding; padded rows are zeros and sliced off below.
        x = jnp.pad(x, ((0, b_p - B), (0, 0)))

    grid = (b_p // tb,)
    out = pl.pallas_call(
        _mlp_kernel,
        out_shape=jax.ShapeDtypeStruct((b_p, out_f), x.dtype),
        grid=grid,
        in_specs=[
            # x: tiled over batch; last dim equals the full array dim (legal).
            pl.BlockSpec((tb, in_f), lambda i: (i, 0)),
            # weights / biases: full arrays, VMEM-resident across the grid.
            pl.BlockSpec((in_f, hidden), lambda i: (0, 0)),
            pl.BlockSpec((1, hidden), lambda i: (0, 0)),
            pl.BlockSpec((hidden, out_f), lambda i: (0, 0)),
            pl.BlockSpec((1, out_f), lambda i: (0, 0)),
        ],
        out_specs=pl.BlockSpec((tb, out_f), lambda i: (i, 0)),
        compiler_params=pltpu.CompilerParams(
            dimension_semantics=("parallel",)),
    )(x, w1_t, b1, w2_t, b2)

    return out[:B] if b_p != B else out


def init_params(key, input_size, hidden_size, output_size, dtype=jnp.float32):
    """Deterministic init matching nn.Linear's U(-1/sqrt(fan_in), 1/sqrt(fan_in))."""
    k1, k2, k3, k4 = jax.random.split(key, 4)
    bound1 = 1.0 / jnp.sqrt(jnp.array(input_size, dtype))
    bound2 = 1.0 / jnp.sqrt(jnp.array(hidden_size, dtype))
    # Stored already transposed: [in, out]
    w1_t = jax.random.uniform(k1, (input_size, hidden_size), dtype,
                              minval=-bound1, maxval=bound1)
    b1 = jax.random.uniform(k2, (1, hidden_size), dtype,
                            minval=-bound1, maxval=bound1)
    w2_t = jax.random.uniform(k3, (hidden_size, output_size), dtype,
                              minval=-bound2, maxval=bound2)
    b2 = jax.random.uniform(k4, (1, output_size), dtype,
                            minval=-bound2, maxval=bound2)
    return w1_t, b1, w2_t, b2


def _ref_forward(x, w1_t, b1, w2_t, b2):
    return jnp.maximum(x @ w1_t + b1, 0.0) @ w2_t + b2


if __name__ == "__main__":
    # Small shapes consistent with the module: input=16, hidden=32, out=4.
    input_size, hidden_size, output_size = 16, 32, 4

    key = jax.random.PRNGKey(0)
    k_params, k_x1, k_x2 = jax.random.split(key, 3)
    w1_t, b1, w2_t, b2 = init_params(k_params, input_size, hidden_size,
                                     output_size)

    fwd = jax.jit(functools.partial(mlp_forward, block_b=4096))

    # --- test 1: tiny batch (single grid step) ---------------------------------
    batch = 8
    x = jax.random.normal(k_x1, (batch, input_size), dtype=jnp.float32)
    y = jax.block_until_ready(fwd(x, w1_t, b1, w2_t, b2))
    y_ref = _ref_forward(x, w1_t, b1, w2_t, b2)
    assert y.shape == (batch, output_size)
    # Full f32 path -> tight tolerance vs the f32 reference.
    assert jnp.allclose(y, y_ref, atol=5e-3, rtol=5e-3), "tiny-batch mismatch"

    # --- test 2: ragged batch exercising the batch grid + padding slice --------
    batch2 = 1000  # -> tb=504, padded to 1008, grid=(2,)
    x2 = jax.random.normal(k_x2, (batch2, input_size), dtype=jnp.float32)
    y2 = jax.block_until_ready(fwd(x2, w1_t, b1, w2_t, b2))
    y2_ref = _ref_forward(x2, w1_t, b1, w2_t, b2)
    assert y2.shape == (batch2, output_size)
    assert jnp.allclose(y2, y2_ref, atol=5e-3, rtol=5e-3), "gridded-batch mismatch"

    print("KERNEL_OK")
</pallas_src>

<mosaic_0001>
module attributes {stable_mosaic.version = 11 : i64} {
  func.func @_mlp_kernel(%arg0: i32, %arg1: memref<8x16xf32, #tpu.memory_space<vmem>>, %arg2: memref<16x32xf32, #tpu.memory_space<vmem>>, %arg3: memref<1x32xf32, #tpu.memory_space<vmem>>, %arg4: memref<32x4xf32, #tpu.memory_space<vmem>>, %arg5: memref<1x4xf32, #tpu.memory_space<vmem>>, %arg6: memref<8x4xf32, #tpu.memory_space<vmem>>) attributes {dimension_semantics = [#tpu.dimension_semantics<parallel>], iteration_bounds = array<i64: 1>, scalar_prefetch = 0 : i64, scratch_operands = 0 : i64, tpu.core_type = #tpu.core_type<tc>, window_params = [{transform_indices = @transform_0, window_bounds = array<i64: 8, 16>}, {pipeline_mode = #tpu.pipeline_mode<synchronous>, transform_indices = @transform_1, window_bounds = array<i64: 16, 32>}, {pipeline_mode = #tpu.pipeline_mode<synchronous>, transform_indices = @transform_2, window_bounds = array<i64: 1, 32>}, {pipeline_mode = #tpu.pipeline_mode<synchronous>, transform_indices = @transform_3, window_bounds = array<i64: 32, 4>}, {pipeline_mode = #tpu.pipeline_mode<synchronous>, transform_indices = @transform_4, window_bounds = array<i64: 1, 4>}, {transform_indices = @transform_5, window_bounds = array<i64: 8, 4>}]} {
    %c0 = arith.constant 0 : index
    %c0_0 = arith.constant 0 : index
    %0 = vector.load %arg1[%c0, %c0_0] : memref<8x16xf32, #tpu.memory_space<vmem>>, vector<8x16xf32>
    %c0_1 = arith.constant 0 : index
    %c0_2 = arith.constant 0 : index
    %1 = vector.load %arg2[%c0_1, %c0_2] : memref<16x32xf32, #tpu.memory_space<vmem>>, vector<16x32xf32>
    %cst = arith.constant dense<0.000000e+00> : vector<8x32xf32>
    %2 = tpu.matmul %0, %1, %cst {dimension_numbers = #tpu.dot_dimension_numbers<[1], [0], [0], [1], [0, 0, 1, 1], [], []>} : vector<8x16xf32>, vector<16x32xf32>, vector<8x32xf32> -> vector<8x32xf32>
    %c0_3 = arith.constant 0 : index
    %c0_4 = arith.constant 0 : index
    %3 = vector.load %arg3[%c0_3, %c0_4] : memref<1x32xf32, #tpu.memory_space<vmem>>, vector<1x32xf32>
    %4 = vector.broadcast %3 : vector<1x32xf32> to vector<8x32xf32>
    %5 = arith.addf %2, %4 : vector<8x32xf32>
    %cst_5 = arith.constant 0.000000e+00 : f32
    %6 = vector.broadcast %cst_5 : f32 to vector<8x32xf32>
    %7 = arith.maximumf %5, %6 : vector<8x32xf32>
    %c0_6 = arith.constant 0 : index
    %c0_7 = arith.constant 0 : index
    %8 = vector.load %arg5[%c0_6, %c0_7] : memref<1x4xf32, #tpu.memory_space<vmem>>, vector<1x4xf32>
    %c0_8 = arith.constant 0 : index
    %c0_9 = arith.constant 0 : index
    %9 = vector.load %arg4[%c0_8, %c0_9] : memref<32x4xf32, #tpu.memory_space<vmem>>, vector<32x4xf32>
    %cst_10 = arith.constant dense<0.000000e+00> : vector<8x4xf32>
    %10 = tpu.matmul %7, %9, %cst_10 {dimension_numbers = #tpu.dot_dimension_numbers<[1], [0], [0], [1], [0, 0, 1, 1], [], []>} : vector<8x32xf32>, vector<32x4xf32>, vector<8x4xf32> -> vector<8x4xf32>
    %11 = vector.broadcast %8 : vector<1x4xf32> to vector<8x4xf32>
    %12 = arith.addf %11, %10 : vector<8x4xf32>
    %c0_11 = arith.constant 0 : index
    %c0_12 = arith.constant 0 : index
    %13 = vector.load %arg6[%c0_11, %c0_12] : memref<8x4xf32, #tpu.memory_space<vmem>>, vector<8x4xf32>
    tpu.vector_store %arg6[%c0_11, %c0_12], %12 {strides = array<i32>} : memref<8x4xf32, #tpu.memory_space<vmem>>, vector<8x4xf32>,
    return
  }
  func.func @transform_0(%arg0: i32) -> (i32, i32) {
    %c0_i32 = arith.constant 0 : i32
    %c0_i32_0 = arith.constant 0 : i32
    return %arg0, %c0_i32 : i32, i32
  }
  func.func @transform_1(%arg0: i32) -> (i32, i32) {
    %c0_i32 = arith.constant 0 : i32
    %c0_i32_0 = arith.constant 0 : i32
    %c0_i32_1 = arith.constant 0 : i32
    return %c0_i32, %c0_i32_0 : i32, i32
  }
  func.func @transform_2(%arg0: i32) -> (i32, i32) {
    %c0_i32 = arith.constant 0 : i32
    %c0_i32_0 = arith.constant 0 : i32
    %c0_i32_1 = arith.constant 0 : i32
    return %c0_i32, %c0_i32_0 : i32, i32
  }
  func.func @transform_3(%arg0: i32) -> (i32, i32) {
    %c0_i32 = arith.constant 0 : i32
    %c0_i32_0 = arith.constant 0 : i32
    %c0_i32_1 = arith.constant 0 : i32
    return %c0_i32, %c0_i32_0 : i32, i32
  }
  func.func @transform_4(%arg0: i32) -> (i32, i32) {
    %c0_i32 = arith.constant 0 : i32
    %c0_i32_0 = arith.constant 0 : i32
    %c0_i32_1 = arith.constant 0 : i32
    return %c0_i32, %c0_i32_0 : i32, i32
  }
  func.func @transform_5(%arg0: i32) -> (i32, i32) {
    %c0_i32 = arith.constant 0 : i32
    %c0_i32_0 = arith.constant 0 : i32
    return %arg0, %c0_i32 : i32, i32
  }
}

</mosaic_0001>

<llo_original>
// kernel: mlp_forward.1
$region0: #{mlp_forward.1}
  #allocation0 [shape = 'u32[]', space=smem, size = 0x4, offset = 0x4, fixed_abs, tag = 'smem constant byte address 0x4 - core index']
  #allocation1 [shape = 'u32[144,128]{1,0:T(1,128)}', space=vmem, size = 0x12000, scoped, tag = 'internal scratch']
  %s0 = inlined_call_operand.vmem [shape: f32[8,16], index: 0, kind: input, shape index: {}]
  %s1 = inlined_call_operand.vmem [shape: f32[16,32], index: 1, kind: input, shape index: {}]
  %s2 = inlined_call_operand.vmem [shape: f32[1,32], index: 2, kind: input, shape index: {}]
  %s3 = inlined_call_operand.vmem [shape: f32[32,4], index: 3, kind: input, shape index: {}]
  %s4 = inlined_call_operand.vmem [shape: f32[1,4], index: 4, kind: input, shape index: {}]
  %s5 = inlined_call_operand.vmem [shape: f32[8,4], index: 5, kind: output, shape index: {}]
  %s6 = sld [smem:[#allocation0]]
  $region30: #{mlp_forward.1} parent=0
    _
  %s8 = ssub.s32 1, %s6
  %s9 = scalar_select 0, %s8, %s6
  // Predicated region
  $region2: #{mlp_forward.1} parent=0 // pred_check
    _
  $region3: #{mlp_forward.1} parent=0 // pred_check_branch
    %11 = sbr.rel (0) target = $region5
  $region4: #{mlp_forward.1} parent=0 // pred_region
    _
  $region5: #{mlp_forward.1} parent=0 // pred_fallthru
    _
  // Predicated region
  $region6: #{mlp_forward.1} parent=0 // pred_check
    _
  $region7: #{mlp_forward.1} parent=0 // pred_check_branch
    %13 = sbr.rel (0) target = $region9
  $region8: #{mlp_forward.1} parent=0 // pred_region
    _
  $region9: #{mlp_forward.1} parent=0 // pred_fallthru
    _
  // Predicated region
  $region10: #{mlp_forward.1} parent=0 // pred_check
    _
  $region11: #{mlp_forward.1} parent=0 // pred_check_branch
    %15 = sbr.rel (0) target = $region13
  $region12: #{mlp_forward.1} parent=0 // pred_region
    _
  $region13: #{mlp_forward.1} parent=0 // pred_fallthru
    _
  // Predicated region
  $region14: #{mlp_forward.1} parent=0 // pred_check
    _
  $region15: #{mlp_forward.1} parent=0 // pred_check_branch
    %17 = sbr.rel (0) target = $region17
  $region16: #{mlp_forward.1} parent=0 // pred_region
    _
  $region17: #{mlp_forward.1} parent=0 // pred_fallthru
    _
  // Predicated region
  $region18: #{mlp_forward.1} parent=0 // pred_check
    _
  $region19: #{mlp_forward.1} parent=0 // pred_check_branch
    %19 = sbr.rel (0) target = $region21
  $region20: #{mlp_forward.1} parent=0 // pred_region
    _
  $region21: #{mlp_forward.1} parent=0 // pred_fallthru
    _
  %v20 = vld [vmem:[%s0] sm:$0xff]
  %v21 = vld [vmem:[%s1] sm:$0xff]
  %v22 = vld [vmem:[%s1 + $0x8] sm:$0xff]
  %v23 = vld [vmem:[%s2] sm:$0x1]
  %v25 = vlaneseq
  %v26 = vshrl.u32 %v25, 7
  %v27 = vsub.s32 0, %v26
  %v28 = vrot.slane %v23, %v27
  %vm30 = vcmask 130048
  %v32 = vsel %vm30, %v20, 0
  %34 = vmatprep.subr.mxu0 0.0
  %35 = vmatpush1.msra.mxu0 %v21
  %36 = vmatprep.subr.mxu0 0.0
  %37 = vmatpush1.msra.mxu0 %v22
  %38 = vmatprep.subr.mxu0 0.0
  %39 = vmatpush1.msra.mxu0 0.0
  %40 = vmatprep.subr.mxu0 0.0
  %41 = vmatpush1.msra.mxu0 0.0
  %42 = vmatprep.subr.mxu0 0.0
  %43 = vmatpush1.msra.mxu0 0.0
  %44 = vmatprep.subr.mxu0 0.0
  %45 = vmatpush1.msra.mxu0 0.0
  %46 = vmatprep.subr.mxu0 0.0
  %47 = vmatpush1.msra.mxu0 0.0
  %48 = vmatprep.subr.mxu0 0.0
  %49 = vmatpush1.msra.mxu0 0.0
  %50 = vmatprep.subr.mxu0 0.0
  %51 = vmatpush1.msra.mxu0 0.0
  %52 = vmatprep.subr.mxu0 0.0
  %53 = vmatpush1.msra.mxu0 0.0
  %54 = vmatprep.subr.mxu0 0.0
  %55 = vmatpush1.msra.mxu0 0.0
  %56 = vmatprep.subr.mxu0 0.0
  %57 = vmatpush1.msra.mxu0 0.0
  %58 = vmatprep.subr.mxu0 0.0
  %59 = vmatpush1.msra.mxu0 0.0
  %60 = vmatprep.subr.mxu0 0.0
  %61 = vmatpush1.msra.mxu0 0.0
  %62 = vmatprep.subr.mxu0 0.0
  %63 = vmatpush1.msra.mxu0 0.0
  %64 = vmatprep.subr.mxu0 0.0
  %65 = vmatpush1.msra.mxu0 0.0
  %66 = vmatprep.subr.mxu0 0.0
  %67 = vmatpush1.msra.mxu0 0.0
  %68 = vmatprep.subr.mxu0 0.0
  %69 = vmatpush1.msra.mxu0 0.0
  %70 = vmatprep.subr.mxu0 0.0
  %71 = vmatpush1.msra.mxu0 0.0
  %72 = vmatprep.subr.mxu0 0.0
  %73 = vmatpush1.msra.mxu0 0.0
  %74 = vmatprep.subr.mxu0 0.0
  %75 = vmatpush1.msra.mxu0 0.0
  %76 = vmatprep.subr.mxu0 0.0
  %77 = vmatpush1.msra.mxu0 0.0
  %78 = vmatprep.subr.mxu0 0.0
  %79 = vmatpush1.msra.mxu0 0.0
  %80 = vmatprep.subr.mxu0 0.0
  %81 = vmatpush1.msra.mxu0 0.0
  %82 = vmatprep.subr.mxu0 0.0
  %83 = vmatpush1.msra.mxu0 0.0
  %84 = vmatprep.subr.mxu0 0.0
  %85 = vmatpush1.msra.mxu0 0.0
  %86 = vmatprep.subr.mxu0 0.0
  %87 = vmatpush1.msra.mxu0 0.0
  %88 = vmatprep.subr.mxu0 0.0
  %89 = vmatpush1.msra.mxu0 0.0
  %90 = vmatprep.subr.mxu0 0.0
  %91 = vmatpush1.msra.mxu0 0.0
  %92 = vmatprep.subr.mxu0 0.0
  %93 = vmatpush1.msra.mxu0 0.0
  %94 = vmatprep.subr.mxu0 0.0
  %95 = vmatpush1.msra.mxu0 0.0
  %96 = vmatprep.subr.mxu0 0.0
  %97 = vmatpush1.msra.mxu0 0.0
  %98 = vmatprep.mubr.f32.mxu0 0.0
  %99 = vmatmul.mubr.f32.gmra.mrb[0].mxu0 %v32
  %v100 = vpop.f32.mrb[0].mxu0
  %v101 = vadd.f32 %v28, %v100
  %v102 = vpop.f32.mrb[0].mxu0
  %103 = vdwg.mxu0
  %v104 = vmax.f32 %v101, 0.0
  %v105 = vld [vmem:[%s4] sm:$0x1]
  %v106 = vld [vmem:[%s3] sm:$0xff]
  %v107 = vld [vmem:[%s3 + $0x8] sm:$0xff]
  %v108 = vld [vmem:[%s3 + $0x10] sm:$0xff]
  %v109 = vld [vmem:[%s3 + $0x18] sm:$0xff]
  %vm110 = vcmask 261120
  %v112 = vsel %vm110, %v104, 0
  %114 = vmatprep.subr.mxu0 0.0
  %115 = vmatpush1.msra.mxu0 %v106
  %116 = vmatprep.subr.mxu0 0.0
  %117 = vmatpush1.msra.mxu0 %v107
  %118 = vmatprep.subr.mxu0 0.0
  %119 = vmatpush1.msra.mxu0 %v108
  %120 = vmatprep.subr.mxu0 0.0
  %121 = vmatpush1.msra.mxu0 %v109
  %122 = vmatprep.subr.mxu0 0.0
  %123 = vmatpush1.msra.mxu0 0.0
  %124 = vmatprep.subr.mxu0 0.0
  %125 = vmatpush1.msra.mxu0 0.0
  %126 = vmatprep.subr.mxu0 0.0
  %127 = vmatpush1.msra.mxu0 0.0
  %128 = vmatprep.subr.mxu0 0.0
  %129 = vmatpush1.msra.mxu0 0.0
  %130 = vmatprep.subr.mxu0 0.0
  %131 = vmatpush1.msra.mxu0 0.0
  %132 = vmatprep.subr.mxu0 0.0
  %133 = vmatpush1.msra.mxu0 0.0
  %134 = vmatprep.subr.mxu0 0.0
  %135 = vmatpush1.msra.mxu0 0.0
  %136 = vmatprep.subr.mxu0 0.0
  %137 = vmatpush1.msra.mxu0 0.0
  %138 = vmatprep.subr.mxu0 0.0
  %139 = vmatpush1.msra.mxu0 0.0
  %140 = vmatprep.subr.mxu0 0.0
  %141 = vmatpush1.msra.mxu0 0.0
  %142 = vmatprep.subr.mxu0 0.0
  %143 = vmatpush1.msra.mxu0 0.0
  %144 = vmatprep.subr.mxu0 0.0
  %145 = vmatpush1.msra.mxu0 0.0
  %146 = vmatprep.subr.mxu0 0.0
  %147 = vmatpush1.msra.mxu0 0.0
  %148 = vmatprep.subr.mxu0 0.0
  %149 = vmatpush1.msra.mxu0 0.0
  %150 = vmatprep.subr.mxu0 0.0
  %151 = vmatpush1.msra.mxu0 0.0
  %152 = vmatprep.subr.mxu0 0.0
  %153 = vmatpush1.msra.mxu0 0.0
  %154 = vmatprep.subr.mxu0 0.0
  %155 = vmatpush1.msra.mxu0 0.0
  %156 = vmatprep.subr.mxu0 0.0
  %157 = vmatpush1.msra.mxu0 0.0
  %158 = vmatprep.subr.mxu0 0.0
  %159 = vmatpush1.msra.mxu0 0.0
  %160 = vmatprep.subr.mxu0 0.0
  %161 = vmatpush1.msra.mxu0 0.0
  %162 = vmatprep.subr.mxu0 0.0
  %163 = vmatpush1.msra.mxu0 0.0
  %164 = vmatprep.subr.mxu0 0.0
  %165 = vmatpush1.msra.mxu0 0.0
  %166 = vmatprep.subr.mxu0 0.0
  %167 = vmatpush1.msra.mxu0 0.0
  %168 = vmatprep.subr.mxu0 0.0
  %169 = vmatpush1.msra.mxu0 0.0
  %170 = vmatprep.subr.mxu0 0.0
  %171 = vmatpush1.msra.mxu0 0.0
  %172 = vmatprep.subr.mxu0 0.0
  %173 = vmatpush1.msra.mxu0 0.0
  %174 = vmatprep.subr.mxu0 0.0
  %175 = vmatpush1.msra.mxu0 0.0
  %176 = vmatprep.subr.mxu0 0.0
  %177 = vmatpush1.msra.mxu0 0.0
  %178 = vmatprep.mubr.f32.mxu0 0.0
  %179 = vmatmul.mubr.f32.gmra.mrb[0].mxu0 %v112
  %v180 = vpop.f32.mrb[0].mxu0
  %v181 = vadd.f32 0.0, %v180
  %v182 = vpop.f32.mrb[0].mxu0
  %183 = vdwg.mxu0
  %v185 = vlaneseq
  %v186 = vshrl.u32 %v185, 7
  %v187 = vsub.s32 0, %v186
  %v188 = vrot.slane %v105, %v187
  %v190 = vadd.f32 %v188, %v181
  %vm191 = vcmask 31744
  %192 = vst.msk [vmem:[%s5] sm:$0xff] %vm191, %v190
  // Predicated region
  $region22: #{mlp_forward.1} parent=0 // pred_check
    _
  $region23: #{mlp_forward.1} parent=0 // pred_check_branch
    %194 = sbr.rel (0) target = $region25
  $region24: #{mlp_forward.1} parent=0 // pred_region
    _
  $region25: #{mlp_forward.1} parent=0 // pred_fallthru
    _
  // Predicated region
  $region26: #{mlp_forward.1} parent=0 // pred_check
    _
  $region27: #{mlp_forward.1} parent=0 // pred_check_branch
    %196 = sbr.rel (0) target = $region29
  $region28: #{mlp_forward.1} parent=0 // pred_region
    _
  $region29: #{mlp_forward.1} parent=0 // pred_fallthru
    _

</llo_original>
